<compile_context>
chip_gen: v5e
topology: v5e:2x2
jax: 0.10.0
libtpu: 0.0.40
codegen_flags: <defaults>
</compile_context>

<pallas_src>
import functools

import jax
import jax.numpy as jnp
from jax.experimental import pallas as pl
from jax.experimental.pallas import tpu as pltpu

LEAKY_SLOPE = 0.01
BN_EPS = 1e-5


def _leaky(x):
    return jnp.where(x >= 0, x, LEAKY_SLOPE * x)


def _dsconvt1d_kernel(x_ref, dww_ref, sb1_ref, pww_ref, sb2_ref, mask_ref,
                      o_ref, *, n_lp, k, inv_count):
    """Fused DW ConvTranspose1d + BN + LeakyReLU + 1x1 Conv + BN + LeakyReLU.

    Layout (channel-major, length flattened over batch and padded per segment):
      x_ref  : (Cin,  (K-1) + N*Lp)  each Lp segment carries >= K-1 trailing
                                     zeros; K-1 leading zeros let every shifted
                                     depthwise window be one static slice.
      o_ref  : (Cout, N*Lp)          N*Lp % 128 == 0 -> lane-dense stores.
    """
    dww = dww_ref[...]                                       # (Cin, K)

    # ---- Depthwise ConvTranspose1d: y[c,t] = sum_j w[c,j] * x[c,t-j] -------
    # Term j is a right-shift of x by j lanes == static slice of the
    # left-padded input. Per-segment zero padding prevents cross-batch bleed.
    acc = dww[:, 0:1] * x_ref[:, (k - 1):(k - 1) + n_lp]
    for j in range(1, k):
        acc = acc + dww[:, j:j + 1] * x_ref[:, (k - 1 - j):(k - 1 - j) + n_lp]
    # (ConvTranspose1d bias omitted: cancelled exactly by BN mean subtraction.)

    # ---- BatchNorm1d (batch stats over N, L) + LeakyReLU -------------------
    # Padding lanes of `acc` are exactly zero, so full-width sums equal sums
    # over the valid region; divide by the valid element count.
    s1 = jnp.sum(acc, axis=1, keepdims=True)                 # (Cin, 1)
    ss1 = jnp.sum(acc * acc, axis=1, keepdims=True)          # (Cin, 1)
    mu1 = s1 * inv_count
    var1 = jnp.maximum(ss1 * inv_count - mu1 * mu1, 0.0)
    g1 = sb1_ref[:, 0:1]
    b1 = sb1_ref[:, 1:2]
    scale1 = g1 * jax.lax.rsqrt(var1 + BN_EPS)
    shift1 = b1 - mu1 * scale1
    h = _leaky(acc * scale1 + shift1)
    # Zero padding lanes so the matmul sees exact zeros and BN2 can again use
    # full-width sums.
    h = h * mask_ref[...]

    # ---- Pointwise 1x1 Conv1d: one MXU matmul over the whole N*L free dim --
    pww = pww_ref[...]                                       # (Cout, Cin)
    z = jnp.dot(pww, h, preferred_element_type=jnp.float32)  # (Cout, N*Lp)
    # (pointwise bias omitted for the same reason as above.)

    # ---- BatchNorm1d + LeakyReLU -------------------------------------------
    s2 = jnp.sum(z, axis=1, keepdims=True)                   # (Cout, 1)
    ss2 = jnp.sum(z * z, axis=1, keepdims=True)
    mu2 = s2 * inv_count
    var2 = jnp.maximum(ss2 * inv_count - mu2 * mu2, 0.0)
    g2 = sb2_ref[:, 0:1]
    b2 = sb2_ref[:, 1:2]
    scale2 = g2 * jax.lax.rsqrt(var2 + BN_EPS)
    shift2 = b2 - mu2 * scale2
    o_ref[...] = _leaky(z * scale2 + shift2).astype(o_ref.dtype)


def depth_separable_conv_transpose1d(x, params):
    """x: (N, Cin, L) float32 -> (N, Cout, L + K - 1) float32."""
    n, cin, l = x.shape
    cout = params["pw_w"].shape[0]
    k = params["dw_w"].shape[1]
    lout = l + k - 1                       # stride=1, padding=0, dilation=1
    lp = -(-lout // 128) * 128             # per-segment length, lane multiple
    n_lp = n * lp

    # (N, Cin, L) -> (Cin, N, Lp) -> (Cin, N*Lp), plus K-1 leading zeros so the
    # kernel's shifted depthwise windows are plain static slices.
    xt = jnp.transpose(x, (1, 0, 2))
    xt = jnp.pad(xt, ((0, 0), (0, 0), (0, lp - l)))
    xf = jnp.pad(xt.reshape(cin, n_lp), ((0, 0), (k - 1, 0)))

    # Pack per-channel BN affine params: column 0 = gamma, column 1 = beta.
    sb1 = jnp.concatenate([params["bn1_g"], params["bn1_b"]], axis=1)  # (Cin,2)
    sb2 = jnp.concatenate([params["bn2_g"], params["bn2_b"]], axis=1)  # (Cout,2)

    # 1.0 on valid output positions, 0.0 on per-segment padding lanes.
    mask = jnp.tile((jnp.arange(lp) < lout).astype(jnp.float32), (n,))[None, :]

    kernel = functools.partial(
        _dsconvt1d_kernel, n_lp=n_lp, k=k, inv_count=1.0 / float(n * lout))

    vmem = pl.BlockSpec(memory_space=pltpu.MemorySpace.VMEM)
    out_flat = pl.pallas_call(
        kernel,
        out_shape=jax.ShapeDtypeStruct((cout, n_lp), jnp.float32),
        in_specs=[vmem] * 6,
        out_specs=vmem,
        # Small shapes: single fully-VMEM-resident block; explicit budget fits
        # every TPU generation (incl. v7x's 64 MiB physical VMEM).
        # TODO(synk): for large (N, C, L) this must become a two-pass tiled
        # grid (depthwise + stats pass, then normalize + matmul pass), because
        # training-mode BatchNorm couples every (n, l) position.
        compiler_params=pltpu.CompilerParams(
            vmem_limit_bytes=32 * 1024 * 1024),
    )(xf, params["dw_w"], sb1, params["pw_w"], sb2, mask)

    out = out_flat.reshape(cout, n, lp)[:, :, :lout]
    return jnp.transpose(out, (1, 0, 2))


def init_params(key, cin, cout, k):
    ks = jax.random.split(key, 8)
    return {
        # Depthwise ConvTranspose1d weight: PyTorch (Cin, 1, K) -> (Cin, K)
        "dw_w": 0.3 * jax.random.normal(ks[0], (cin, k), jnp.float32),
        # Conv biases exist in the PyTorch module but are provably no-ops
        # under the training-mode BatchNorm that follows; kept for fidelity,
        # not passed to the kernel.
        "dw_b": 0.1 * jax.random.normal(ks[1], (cin, 1), jnp.float32),
        # BatchNorm1d(Cin) affine params
        "bn1_g": 1.0 + 0.1 * jax.random.normal(ks[2], (cin, 1), jnp.float32),
        "bn1_b": 0.1 * jax.random.normal(ks[3], (cin, 1), jnp.float32),
        # Pointwise Conv1d weight: PyTorch (Cout, Cin, 1) -> (Cout, Cin)
        "pw_w": 0.3 * jax.random.normal(ks[4], (cout, cin), jnp.float32),
        "pw_b": 0.1 * jax.random.normal(ks[5], (cout, 1), jnp.float32),
        # BatchNorm1d(Cout) affine params
        "bn2_g": 1.0 + 0.1 * jax.random.normal(ks[6], (cout, 1), jnp.float32),
        "bn2_b": 0.1 * jax.random.normal(ks[7], (cout, 1), jnp.float32),
    }


if __name__ == "__main__":
    N, Cin, Cout, L, K = 2, 4, 8, 16, 3

    root = jax.random.PRNGKey(0)
    k_x, k_p = jax.random.split(root)
    x = jax.random.normal(k_x, (N, Cin, L), jnp.float32)
    params = init_params(k_p, Cin, Cout, K)

    out = depth_separable_conv_transpose1d(x, params)
    out = jax.block_until_ready(out)
    assert out.shape == (N, Cout, L + K - 1), out.shape
    assert out.dtype == jnp.float32
    print("KERNEL_OK")
</pallas_src>

<mosaic_0001>
module attributes {stable_mosaic.version = 11 : i64} {
  func.func @_dsconvt1d_kernel(%arg0: memref<4x258xf32, #tpu.memory_space<vmem>>, %arg1: memref<4x3xf32, #tpu.memory_space<vmem>>, %arg2: memref<4x2xf32, #tpu.memory_space<vmem>>, %arg3: memref<8x4xf32, #tpu.memory_space<vmem>>, %arg4: memref<8x2xf32, #tpu.memory_space<vmem>>, %arg5: memref<1x256xf32, #tpu.memory_space<vmem>>, %arg6: memref<8x256xf32, #tpu.memory_space<vmem>>) attributes {dimension_semantics = [], scalar_prefetch = 0 : i64, scratch_operands = 0 : i64, tpu.core_type = #tpu.core_type<tc>} {
    %c0 = arith.constant 0 : index
    %c0_0 = arith.constant 0 : index
    %0 = vector.load %arg1[%c0, %c0_0] : memref<4x3xf32, #tpu.memory_space<vmem>>, vector<4x3xf32>
    %1 = vector.extract_strided_slice %0 {offsets = [0, 0], sizes = [4, 1], strides = [1, 1]} : vector<4x3xf32> to vector<4x1xf32>
    %c0_1 = arith.constant 0 : index
    %c2 = arith.constant 2 : index
    %2 = vector.load %arg0[%c0_1, %c2] : memref<4x258xf32, #tpu.memory_space<vmem>>, vector<4x256xf32>
    %3 = vector.broadcast %1 : vector<4x1xf32> to vector<4x256xf32>
    %4 = arith.mulf %3, %2 : vector<4x256xf32>
    %5 = vector.extract_strided_slice %0 {offsets = [0, 1], sizes = [4, 1], strides = [1, 1]} : vector<4x3xf32> to vector<4x1xf32>
    %c0_2 = arith.constant 0 : index
    %c1 = arith.constant 1 : index
    %6 = vector.load %arg0[%c0_2, %c1] : memref<4x258xf32, #tpu.memory_space<vmem>>, vector<4x256xf32>
    %7 = vector.broadcast %5 : vector<4x1xf32> to vector<4x256xf32>
    %8 = arith.mulf %7, %6 : vector<4x256xf32>
    %9 = arith.addf %4, %8 : vector<4x256xf32>
    %10 = vector.extract_strided_slice %0 {offsets = [0, 2], sizes = [4, 1], strides = [1, 1]} : vector<4x3xf32> to vector<4x1xf32>
    %c0_3 = arith.constant 0 : index
    %c0_4 = arith.constant 0 : index
    %11 = vector.load %arg0[%c0_3, %c0_4] : memref<4x258xf32, #tpu.memory_space<vmem>>, vector<4x256xf32>
    %12 = vector.broadcast %10 : vector<4x1xf32> to vector<4x256xf32>
    %13 = arith.mulf %12, %11 : vector<4x256xf32>
    %14 = arith.addf %9, %13 : vector<4x256xf32>
    %cst = arith.constant dense<0.000000e+00> : vector<4xf32>
    %15 = vector.multi_reduction <add>, %14, %cst [1] : vector<4x256xf32> to vector<4xf32>
    %16 = vector.shape_cast %15 : vector<4xf32> to vector<4x1xf32>
    %17 = arith.mulf %14, %14 : vector<4x256xf32>
    %cst_5 = arith.constant dense<0.000000e+00> : vector<4xf32>
    %18 = vector.multi_reduction <add>, %17, %cst_5 [1] : vector<4x256xf32> to vector<4xf32>
    %19 = vector.shape_cast %18 : vector<4xf32> to vector<4x1xf32>
    %cst_6 = arith.constant 0.027777778 : f32
    %20 = vector.broadcast %cst_6 : f32 to vector<4x1xf32>
    %21 = arith.mulf %16, %20 : vector<4x1xf32>
    %cst_7 = arith.constant 0.027777778 : f32
    %22 = vector.broadcast %cst_7 : f32 to vector<4x1xf32>
    %23 = arith.mulf %19, %22 : vector<4x1xf32>
    %24 = arith.mulf %21, %21 : vector<4x1xf32>
    %25 = arith.subf %23, %24 : vector<4x1xf32>
    %cst_8 = arith.constant 0.000000e+00 : f32
    %26 = vector.broadcast %cst_8 : f32 to vector<4x1xf32>
    %27 = arith.maximumf %25, %26 : vector<4x1xf32>
    %c0_9 = arith.constant 0 : index
    %c0_10 = arith.constant 0 : index
    %28 = vector.load %arg2[%c0_9, %c0_10] : memref<4x2xf32, #tpu.memory_space<vmem>>, vector<4x1xf32>
    %c0_11 = arith.constant 0 : index
    %c1_12 = arith.constant 1 : index
    %29 = vector.load %arg2[%c0_11, %c1_12] : memref<4x2xf32, #tpu.memory_space<vmem>>, vector<4x1xf32>
    %cst_13 = arith.constant 9.99999974E-6 : f32
    %30 = vector.broadcast %cst_13 : f32 to vector<4x1xf32>
    %31 = arith.addf %27, %30 : vector<4x1xf32>
    %32 = math.rsqrt %31 : vector<4x1xf32>
    %33 = arith.mulf %28, %32 : vector<4x1xf32>
    %34 = arith.mulf %21, %33 : vector<4x1xf32>
    %35 = arith.subf %29, %34 : vector<4x1xf32>
    %36 = vector.broadcast %33 : vector<4x1xf32> to vector<4x256xf32>
    %37 = arith.mulf %14, %36 : vector<4x256xf32>
    %38 = vector.broadcast %35 : vector<4x1xf32> to vector<4x256xf32>
    %39 = arith.addf %37, %38 : vector<4x256xf32>
    %cst_14 = arith.constant 0.000000e+00 : f32
    %40 = vector.broadcast %cst_14 : f32 to vector<4x256xf32>
    %41 = arith.cmpf oge, %39, %40 : vector<4x256xf32>
    %cst_15 = arith.constant 0.00999999977 : f32
    %42 = vector.broadcast %cst_15 : f32 to vector<4x256xf32>
    %43 = arith.mulf %42, %39 : vector<4x256xf32>
    %44 = arith.select %41, %39, %43 : vector<4x256xi1>, vector<4x256xf32>
    %c0_16 = arith.constant 0 : index
    %c0_17 = arith.constant 0 : index
    %45 = vector.load %arg5[%c0_16, %c0_17] : memref<1x256xf32, #tpu.memory_space<vmem>>, vector<1x256xf32>
    %46 = vector.broadcast %45 : vector<1x256xf32> to vector<4x256xf32>
    %47 = arith.mulf %44, %46 : vector<4x256xf32>
    %c0_18 = arith.constant 0 : index
    %c0_19 = arith.constant 0 : index
    %48 = vector.load %arg3[%c0_18, %c0_19] : memref<8x4xf32, #tpu.memory_space<vmem>>, vector<8x4xf32>
    %cst_20 = arith.constant dense<0.000000e+00> : vector<8x256xf32>
    %49 = tpu.matmul %48, %47, %cst_20 {dimension_numbers = #tpu.dot_dimension_numbers<[1], [0], [0], [1], [0, 0, 1, 1], [], []>} : vector<8x4xf32>, vector<4x256xf32>, vector<8x256xf32> -> vector<8x256xf32>
    %cst_21 = arith.constant dense<0.000000e+00> : vector<8xf32>
    %50 = vector.multi_reduction <add>, %49, %cst_21 [1] : vector<8x256xf32> to vector<8xf32>
    %51 = vector.shape_cast %50 : vector<8xf32> to vector<8x1xf32>
    %52 = arith.mulf %49, %49 : vector<8x256xf32>
    %cst_22 = arith.constant dense<0.000000e+00> : vector<8xf32>
    %53 = vector.multi_reduction <add>, %52, %cst_22 [1] : vector<8x256xf32> to vector<8xf32>
    %54 = vector.shape_cast %53 : vector<8xf32> to vector<8x1xf32>
    %cst_23 = arith.constant 0.027777778 : f32
    %55 = vector.broadcast %cst_23 : f32 to vector<8x1xf32>
    %56 = arith.mulf %51, %55 : vector<8x1xf32>
    %cst_24 = arith.constant 0.027777778 : f32
    %57 = vector.broadcast %cst_24 : f32 to vector<8x1xf32>
    %58 = arith.mulf %54, %57 : vector<8x1xf32>
    %59 = arith.mulf %56, %56 : vector<8x1xf32>
    %60 = arith.subf %58, %59 : vector<8x1xf32>
    %cst_25 = arith.constant 0.000000e+00 : f32
    %61 = vector.broadcast %cst_25 : f32 to vector<8x1xf32>
    %62 = arith.maximumf %60, %61 : vector<8x1xf32>
    %c0_26 = arith.constant 0 : index
    %c0_27 = arith.constant 0 : index
    %63 = vector.load %arg4[%c0_26, %c0_27] : memref<8x2xf32, #tpu.memory_space<vmem>>, vector<8x1xf32>
    %c0_28 = arith.constant 0 : index
    %c1_29 = arith.constant 1 : index
    %64 = vector.load %arg4[%c0_28, %c1_29] : memref<8x2xf32, #tpu.memory_space<vmem>>, vector<8x1xf32>
    %cst_30 = arith.constant 9.99999974E-6 : f32
    %65 = vector.broadcast %cst_30 : f32 to vector<8x1xf32>
    %66 = arith.addf %62, %65 : vector<8x1xf32>
    %67 = math.rsqrt %66 : vector<8x1xf32>
    %68 = arith.mulf %63, %67 : vector<8x1xf32>
    %69 = arith.mulf %56, %68 : vector<8x1xf32>
    %70 = arith.subf %64, %69 : vector<8x1xf32>
    %71 = vector.broadcast %68 : vector<8x1xf32> to vector<8x256xf32>
    %72 = arith.mulf %49, %71 : vector<8x256xf32>
    %73 = vector.broadcast %70 : vector<8x1xf32> to vector<8x256xf32>
    %74 = arith.addf %72, %73 : vector<8x256xf32>
    %cst_31 = arith.constant 0.000000e+00 : f32
    %75 = vector.broadcast %cst_31 : f32 to vector<8x256xf32>
    %76 = arith.cmpf oge, %74, %75 : vector<8x256xf32>
    %cst_32 = arith.constant 0.00999999977 : f32
    %77 = vector.broadcast %cst_32 : f32 to vector<8x256xf32>
    %78 = arith.mulf %77, %74 : vector<8x256xf32>
    %79 = arith.select %76, %74, %78 : vector<8x256xi1>, vector<8x256xf32>
    %c0_33 = arith.constant 0 : index
    %c0_34 = arith.constant 0 : index
    %80 = vector.load %arg6[%c0_33, %c0_34] : memref<8x256xf32, #tpu.memory_space<vmem>>, vector<8x256xf32>
    tpu.vector_store %arg6[%c0_33, %c0_34], %79 {strides = array<i32>} : memref<8x256xf32, #tpu.memory_space<vmem>>, vector<8x256xf32>,
    return
  }
}

</mosaic_0001>

<llo_original>
// kernel: tpu_custom_call.1
$region0: #{tpu_custom_call.1}
  #allocation0 [shape = 'u32[]', space=smem, size = 0x4, offset = 0x4, fixed_abs, tag = 'smem constant byte address 0x4 - core index']
  #allocation1 [shape = 'u32[72,128]{1,0:T(1,128)}', space=vmem, size = 0x9000, scoped, tag = 'internal scratch']
  %s0 = inlined_call_operand.vmem [shape: f32[4,258], index: 0, kind: input, shape index: {}]
  %s1 = inlined_call_operand.vmem [shape: f32[4,3], index: 1, kind: input, shape index: {}]
  %s2 = inlined_call_operand.vmem [shape: f32[4,2], index: 2, kind: input, shape index: {}]
  %s3 = inlined_call_operand.vmem [shape: f32[8,4], index: 3, kind: input, shape index: {}]
  %s4 = inlined_call_operand.vmem [shape: f32[8,2], index: 4, kind: input, shape index: {}]
  %s5 = inlined_call_operand.vmem [shape: f32[1,256], index: 5, kind: input, shape index: {}]
  %s6 = inlined_call_operand.hbm [shape: f32[8,256], index: 6, kind: output, shape index: {}]
  %s7 = sld [smem:[#allocation0]]
  $region34: #{tpu_custom_call.1} parent=0
    _
  %s9 = ssub.s32 1, %s7
  %s10 = scalar_select 0, %s9, %s7
  $region1: #{tpu_custom_call.1} parent=0
    #allocation2 [shape = 'u8[8192]{0}', space=vmem, size = 0x2000, scoped, tag = 'output window, operand 0, single buffered']
    #allocation3 [shape = 's32[1]{0}', space=sflag, size = 0x4, scoped, tag = 'scoped memory for tpu_custom_call.1']
    %11 = vsyncpa [#allocation3], 0
    // Predicated region
    $region2: #{tpu_custom_call.1} parent=1 // pred_check
      _
    $region3: #{tpu_custom_call.1} parent=1 // pred_check_branch
      %13 = sbr.rel (0) target = $region5
    $region4: #{tpu_custom_call.1} parent=1 // pred_region
      _
    $region5: #{tpu_custom_call.1} parent=1 // pred_fallthru
      _
    // Predicated region
    $region6: #{tpu_custom_call.1} parent=1 // pred_check
      _
    $region7: #{tpu_custom_call.1} parent=1 // pred_check_branch
      %15 = sbr.rel (0) target = $region9
    $region8: #{tpu_custom_call.1} parent=1 // pred_region
      _
    $region9: #{tpu_custom_call.1} parent=1 // pred_fallthru
      _
    // Predicated region
    $region10: #{tpu_custom_call.1} parent=1 // pred_check
      _
    $region11: #{tpu_custom_call.1} parent=1 // pred_check_branch
      %17 = sbr.rel (0) target = $region13
    $region12: #{tpu_custom_call.1} parent=1 // pred_region
      _
    $region13: #{tpu_custom_call.1} parent=1 // pred_fallthru
      _
    // Predicated region
    $region14: #{tpu_custom_call.1} parent=1 // pred_check
      _
    $region15: #{tpu_custom_call.1} parent=1 // pred_check_branch
      %19 = sbr.rel (0) target = $region17
    $region16: #{tpu_custom_call.1} parent=1 // pred_region
      _
    $region17: #{tpu_custom_call.1} parent=1 // pred_fallthru
      _
    // Predicated region
    $region18: #{tpu_custom_call.1} parent=1 // pred_check
      _
    $region19: #{tpu_custom_call.1} parent=1 // pred_check_branch
      %21 = sbr.rel (0) target = $region21
    $region20: #{tpu_custom_call.1} parent=1 // pred_region
      _
    $region21: #{tpu_custom_call.1} parent=1 // pred_fallthru
      _
    // Predicated region
    $region22: #{tpu_custom_call.1} parent=1 // pred_check
      _
    $region23: #{tpu_custom_call.1} parent=1 // pred_check_branch
      %23 = sbr.rel (0) target = $region25
    $region24: #{tpu_custom_call.1} parent=1 // pred_region
      _
    $region25: #{tpu_custom_call.1} parent=1 // pred_fallthru
      _
    %v24 = vld [vmem:[%s1] sm:$0xf]
    %v25 = vld [vmem:[%s0] sm:$0xff]
    %v26 = vld [vmem:[%s0 + $0x8] sm:$0xf]
    %28 = vset.pattern.permute.xlu0 0
    %29 = vperm.xlu0 %28, %v24
    %v30 = vpop.permute.xlu0 %29
    %34 = vst [vmem:[#allocation1] ss:$2 sm:$0xff] %v25
    %s35 = scalar_lea.vmem [#allocation1], 16
    %36 = vst [vmem:[%s35] ss:$2 sm:$0xff] %v26
    %v37 = vld.sshfl [vmem:[#allocation1] sm:$0xff pattern:$0x75316420]
    %v38 = vld.sshfl [vmem:[#allocation1 + $0x8] sm:$0xff pattern:$0x75316420]
    %v39 = vld.sshfl [vmem:[#allocation1 + $0x10] sm:$0xff pattern:$0x75316420]
    %40 = vrot.lane.b32.xlu0 %v37, 126
    %v41 = vpop.permute.xlu0 %40
    %42 = vrot.lane.b32.xlu0 %v38, 126
    %v43 = vpop.permute.xlu0 %42
    %44 = vrot.lane.b32.xlu0 %v39, 126
    %v45 = vpop.permute.xlu0 %44
    %vm46 = vcmask 1031168
    %v47 = vsel %vm46, %v41, %v43
    %v48 = vsel %vm46, %v43, %v45
    %v51 = vmul.f32 %v30, %v47
    %v52 = vmul.f32 %v30, %v48
    %v53 = vld [vmem:[%s0] sm:$0xff]
    %v54 = vld [vmem:[%s0 + $0x8] sm:$0xf]
    %55 = vset.pattern.permute.xlu0 1
    %56 = vperm.xlu0 %55, %v24
    %v57 = vpop.permute.xlu0 %56
    %61 = vst [vmem:[#allocation1] ss:$2 sm:$0xff] %v53
    %s62 = scalar_lea.vmem [#allocation1], 16
    %63 = vst [vmem:[%s62] ss:$2 sm:$0xff] %v54
    %v64 = vld.sshfl [vmem:[#allocation1] sm:$0xff pattern:$0x75316420]
    %v65 = vld.sshfl [vmem:[#allocation1 + $0x8] sm:$0xff pattern:$0x75316420]
    %v66 = vld.sshfl [vmem:[#allocation1 + $0x10] sm:$0xff pattern:$0x75316420]
    %67 = vrot.lane.b32.xlu0 %v64, 127
    %v68 = vpop.permute.xlu0 %67
    %69 = vrot.lane.b32.xlu0 %v65, 127
    %v70 = vpop.permute.xlu0 %69
    %71 = vrot.lane.b32.xlu0 %v66, 127
    %v72 = vpop.permute.xlu0 %71
    %vm73 = vcmask 1039360
    %v74 = vsel %vm73, %v68, %v70
    %v75 = vsel %vm73, %v70, %v72
    %v78 = vmul.f32 %v57, %v74
    %v79 = vmul.f32 %v57, %v75
    %v80 = vadd.f32 %v51, %v78
    %v81 = vadd.f32 %v52, %v79
    %v82 = vld [vmem:[%s0] sm:$0xff]
    %83 = vset.pattern.permute.xlu0 2
    %84 = vperm.xlu0 %83, %v24
    %v85 = vpop.permute.xlu0 %84
    %88 = vst [vmem:[#allocation1] ss:$2 sm:$0xff] %v82
    %v89 = vld.sshfl [vmem:[#allocation1] sm:$0xff pattern:$0x75316420]
    %v90 = vld.sshfl [vmem:[#allocation1 + $0x8] sm:$0xff pattern:$0x75316420]
    %v93 = vmul.f32 %v85, %v89
    %v94 = vmul.f32 %v85, %v90
    %v95 = vadd.f32 %v80, %v93
    %v96 = vadd.f32 %v81, %v94
    %vm97 = vcmask 1043456
    %v98 = vsel %vm97, %v95, 0.0
    %v99 = vsel %vm97, %v96, 0.0
    %v100 = vadd.f32 %v98, %v99
    %101 = vadd.xlane.f32.xlu0 %v100
    %v102 = vpop.xlane.xlu0 %101
    %v103 = vmul.f32 %v95, %v95
    %v104 = vmul.f32 %v96, %v96
    %v105 = vsel %vm97, %v103, 0.0
    %v106 = vsel %vm97, %v104, 0.0
    %v107 = vadd.f32 %v105, %v106
    %108 = vadd.xlane.f32.xlu0 %v107
    %v109 = vpop.xlane.xlu0 %108
    %v110 = vmul.f32 %v102, 0.027777778
    %v111 = vmul.f32 %v109, 0.027777778
    %v112 = vmul.f32 %v110, %v110
    %v113 = vsub.f32 %v111, %v112
    %v114 = vmax.f32 %v113, 0.0
    %v115 = vld [vmem:[%s2] sm:$0xf]
    %v116 = vadd.f32 %v114, 1e-05
    %v117 = vrsqrt.pop %v116
    %v118 = vmul.f32 %v117, %v116
    %v119 = vmul.f32 %v118, %v117
    %v120 = vmul.f32 0.5, %v119
    %v121 = vsub.f32 1.5, %v120
    %v122 = vmul.f32 %v117, %v121
    %vm123 = vweird.f32 %v116
    %vm124 = vweird.f32 %v117
    %vm125 = vmor %vm123, %vm124
    %v126 = vsel %vm125, %v117, %v122
    %v127 = vmul.f32 %v115, %v126
    %v128 = vmul.f32 %v110, %v127
    %130 = vrot.lane.b32.xlu0 %v128, 1
    %v131 = vpop.permute.xlu0 %130
    %v133 = vsub.f32 %v115, %v131
    %135 = vset.pattern.permute.xlu0 0
    %136 = vperm.xlu0 %135, %v127
    %v137 = vpop.permute.xlu0 %136
    %v139 = vmul.f32 %v95, %v137
    %v140 = vmul.f32 %v96, %v137
    %142 = vset.pattern.permute.xlu0 1
    %143 = vperm.xlu0 %142, %v133
    %v144 = vpop.permute.xlu0 %143
    %v146 = vadd.f32 %v139, %v144
    %v147 = vadd.f32 %v140, %v144
    %vm148 = vcmp.ge.f32.partialorder %v146, 0.0
    %vm149 = vcmp.ge.f32.partialorder %v147, 0.0
    %v150 = vmul.f32 %v146, 0.01
    %v151 = vmul.f32 %v147, 0.01
    %v152 = vsel %vm148, %v146, %v150
    %v153 = vsel %vm149, %v147, %v151
    %v154 = vld [vmem:[%s5] sm:$0x3]
    %v156 = vperm.slane %v154, 0
    %v157 = vperm.slane %v154, 1
    %v160 = vmul.f32 %v152, %v156
    %v161 = vmul.f32 %v153, %v157
    %v162 = vld [vmem:[%s3] sm:$0xff]
    %vm163 = vcmask 31744
    %v165 = vsel %vm163, %v162, 0
    %v168 = vsel %vm97, %v160, 0
    %v171 = vsel %vm97, %v161, 0
    %173 = vmatpush.msra.mxu0 0.0
    %174 = vmatpush.msra.mxu0 0.0
    %175 = vmatpush.msra.mxu0 0.0
    %176 = vmatpush.msra.mxu0 0.0
    %177 = vmatpush.msra.mxu0 0.0
    %178 = vmatpush.msra.mxu0 0.0
    %179 = vmatpush.msra.mxu0 0.0
    %180 = vmatpush.msra.mxu0 0.0
    %181 = vmatpush.msra.mxu0 0.0
    %182 = vmatpush.msra.mxu0 0.0
    %183 = vmatpush.msra.mxu0 0.0
    %184 = vmatpush.msra.mxu0 0.0
    %185 = vmatpush.msra.mxu0 0.0
    %186 = vmatpush.msra.mxu0 0.0
    %187 = vmatpush.msra.mxu0 0.0
    %188 = vmatpush.msra.mxu0 %v168
    %189 = vmatmul.f32.gmra.mxu0 %v165
    %v190 = vpop.f32.mrf.mxu0
    %v191 = vadd.f32 0.0, %v190
    %192 = vdwg.mxu0
    %193 = vmatpush.msra.mxu0 0.0
    %194 = vmatpush.msra.mxu0 0.0
    %195 = vmatpush.msra.mxu0 0.0
    %196 = vmatpush.msra.mxu0 0.0
    %197 = vmatpush.msra.mxu0 0.0
    %198 = vmatpush.msra.mxu0 0.0
    %199 = vmatpush.msra.mxu0 0.0
    %200 = vmatpush.msra.mxu0 0.0
    %201 = vmatpush.msra.mxu0 0.0
    %202 = vmatpush.msra.mxu0 0.0
    %203 = vmatpush.msra.mxu0 0.0
    %204 = vmatpush.msra.mxu0 0.0
    %205 = vmatpush.msra.mxu0 0.0
    %206 = vmatpush.msra.mxu0 0.0
    %207 = vmatpush.msra.mxu0 0.0
    %208 = vmatpush.msra.mxu0 %v171
    %209 = vmatmul.f32.gmra.mxu0 %v165
    %v210 = vpop.f32.mrf.mxu0
    %v211 = vadd.f32 0.0, %v210
    %212 = vdwg.mxu0
    %v213 = vadd.f32 %v191, %v211
    %214 = vadd.xlane.f32.xlu0 %v213
    %v215 = vpop.xlane.xlu0 %214
    %v216 = vmul.f32 %v191, %v191
    %v217 = vmul.f32 %v211, %v211
    %v218 = vadd.f32 %v216, %v217
    %219 = vadd.xlane.f32.xlu0 %v218
    %v220 = vpop.xlane.xlu0 %219
    %v221 = vmul.f32 %v215, 0.027777778
    %v222 = vmul.f32 %v220, 0.027777778
    %v223 = vmul.f32 %v221, %v221
    %v224 = vsub.f32 %v222, %v223
    %v225 = vmax.f32 %v224, 0.0
    %v226 = vld [vmem:[%s4] sm:$0xff]
    %v227 = vadd.f32 %v225, 1e-05
    %v228 = vrsqrt.pop %v227
    %v229 = vmul.f32 %v228, %v227
    %v230 = vmul.f32 %v229, %v228
    %v231 = vmul.f32 0.5, %v230
    %v232 = vsub.f32 1.5, %v231
    %v233 = vmul.f32 %v228, %v232
    %vm234 = vweird.f32 %v227
    %vm235 = vweird.f32 %v228
    %vm236 = vmor %vm234, %vm235
    %v237 = vsel %vm236, %v228, %v233
    %v238 = vmul.f32 %v226, %v237
    %v239 = vmul.f32 %v221, %v238
    %241 = vrot.lane.b32.xlu0 %v239, 1
    %v242 = vpop.permute.xlu0 %241
    %v244 = vsub.f32 %v226, %v242
    %246 = vset.pattern.permute.xlu0 0
    %247 = vperm.xlu0 %246, %v238
    %v248 = vpop.permute.xlu0 %247
    %v250 = vmul.f32 %v191, %v248
    %v251 = vmul.f32 %v211, %v248
    %253 = vset.pattern.permute.xlu0 1
    %254 = vperm.xlu0 %253, %v244
    %v255 = vpop.permute.xlu0 %254
    %v257 = vadd.f32 %v250, %v255
    %v258 = vadd.f32 %v251, %v255
    %vm259 = vcmp.ge.f32.partialorder %v257, 0.0
    %vm260 = vcmp.ge.f32.partialorder %v258, 0.0
    %v261 = vmul.f32 %v257, 0.01
    %v262 = vmul.f32 %v258, 0.01
    %v263 = vsel %vm259, %v257, %v261
    %v264 = vsel %vm260, %v258, %v262
    %265 = vst [vmem:[#allocation2] sm:$0xff] %v263
    %266 = vst [vmem:[#allocation2 + $0x8] sm:$0xff] %v264
    // Predicated region
    $region26: #{tpu_custom_call.1} parent=1 // pred_check
      _
    $region27: #{tpu_custom_call.1} parent=1 // pred_check_branch
      %268 = sbr.rel (0) target = $region29
    $region28: #{tpu_custom_call.1} parent=1 // pred_region
      %270 = vsyncadd [#allocation3], 0
      %s272 = sshll.u32 [#allocation2], 4
      %s273 = int_to_ptr.vmem [resolvable:$true] %s272
      %s274 = sshll.u32 %s6, 4
      %s275 = int_to_ptr.hbm [resolvable:$true] %s274
      %277 = dma.vmem_to_hbm [thread:$0]  %s273, 256, %s275, [#allocation3]
    $region29: #{tpu_custom_call.1} parent=1 // pred_fallthru
      _
    // Predicated region
    $region30: #{tpu_custom_call.1} parent=1 // pred_check
      _
    $region31: #{tpu_custom_call.1} parent=1 // pred_check_branch
      %279 = sbr.rel (0) target = $region33
    $region32: #{tpu_custom_call.1} parent=1 // pred_region
      %281 = dma.done [#allocation3], 256
    $region33: #{tpu_custom_call.1} parent=1 // pred_fallthru
      _
    %282 = vsyncpa [#allocation3], 1

</llo_original>
